<compile_context>
chip_gen: v6e
topology: v6e:2x2x1
jax: 0.10.0
libtpu: 0.0.40
codegen_flags: <defaults>
</compile_context>

<pallas_src>
import functools

import jax
import jax.numpy as jnp
from jax.experimental import pallas as pl
from jax.experimental.pallas import tpu as pltpu


LANE = 128


def _round_up(n, m):
    return (n + m - 1) // m * m


def pack_rnn_params(w_i2h, b_i2h, w_i2o, b_i2o):
    """One-time weight prep (hoisted out of any per-step loop).

    torch layouts: w_i2h [H, I+H], b_i2h [H], w_i2o [O, I+H], b_i2o [O].

    Returns
      w_x [I, Npad], w_h [H, Npad], b [1, Npad]
    where columns [0:H) are the hidden head, [H:H+O) the output head, and
    [H+O:Npad) zero padding so every kernel store is lane-dense (128 lanes).
    """
    H = w_i2h.shape[0]
    O = w_i2o.shape[0]
    K = w_i2h.shape[1]                      # I + H
    I = K - H
    N = H + O
    Npad = max(LANE, _round_up(N, LANE))

    w = jnp.concatenate([w_i2h, w_i2o], axis=0).T          # [I+H, N]
    w = jnp.pad(w, ((0, 0), (0, Npad - N)))                # [I+H, Npad]
    b = jnp.pad(jnp.concatenate([b_i2h, b_i2o]), (0, Npad - N))[None, :]
    return w[:I], w[I:], b


# ---------------------------------------------------------------------------
# Single-step kernel (exact module forward semantics).
# ---------------------------------------------------------------------------
def _rnn_cell_kernel(x_ref, h_ref, wx_ref, wh_ref, b_ref, y_ref):
    y = jnp.dot(x_ref[...], wx_ref[...], preferred_element_type=jnp.float32)
    y = y + jnp.dot(h_ref[...], wh_ref[...], preferred_element_type=jnp.float32)
    y = y + b_ref[...]
    y_ref[...] = y.astype(y_ref.dtype)


@functools.partial(jax.jit, static_argnames=("hidden_size", "output_size"))
def rnn_cell(x, h, w_x, w_h, b, *, hidden_size, output_size):
    """One RNN step. x: [B, I], h: [B, H] -> (output [B, O], hidden [B, H])."""
    B, I = x.shape
    H = hidden_size
    O = output_size
    Npad = w_x.shape[1]

    full = lambda shape: pl.BlockSpec(shape, lambda: (0,) * len(shape))

    y = pl.pallas_call(
        _rnn_cell_kernel,
        out_shape=jax.ShapeDtypeStruct((B, Npad), x.dtype),
        grid=(),
        in_specs=[
            full((B, I)),
            full((B, H)),
            full((I, Npad)),
            full((H, Npad)),
            full((1, Npad)),
        ],
        out_specs=full((B, Npad)),
    )(x, h, w_x, w_h, b)

    return y[:, H:H + O], y[:, :H]


# ---------------------------------------------------------------------------
# Sequence-fused kernel: whole timestep loop in one pallas_call.
# ---------------------------------------------------------------------------
def _rnn_seq_kernel(h0_ref, x_ref, wx_ref, wh_ref, b_ref, y_ref, h_scr):
    t = pl.program_id(0)

    @pl.when(t == 0)
    def _():
        h_scr[...] = h0_ref[...]

    # h_scr holds the previous step's full [B, Npad] slab; wh_ref rows
    # [H:Npad) are zero, so output/padding columns contribute nothing.
    y = jnp.dot(x_ref[0], wx_ref[...], preferred_element_type=jnp.float32)
    y = y + jnp.dot(h_scr[...], wh_ref[...], preferred_element_type=jnp.float32)
    y = y + b_ref[...]
    h_scr[...] = y.astype(h_scr.dtype)
    y_ref[0] = y.astype(y_ref.dtype)


@functools.partial(jax.jit, static_argnames=("hidden_size", "output_size"))
def rnn_sequence(x_seq, h0, w_x, w_h, b, *, hidden_size, output_size):
    """Run the cell over a sequence. x_seq: [T, B, I], h0: [B, H].

    Returns (outputs [T, B, O], final_hidden [B, H]).
    """
    T, B, I = x_seq.shape
    H = hidden_size
    O = output_size
    Npad = w_x.shape[1]

    # One-time padding to lane-dense shapes (outside the fused grid loop).
    h0_pad = jnp.pad(h0, ((0, 0), (0, Npad - H)))          # [B, Npad]
    w_h_pad = jnp.pad(w_h, ((0, Npad - H), (0, 0)))        # [Npad, Npad], zero rows

    y = pl.pallas_call(
        _rnn_seq_kernel,
        out_shape=jax.ShapeDtypeStruct((T, B, Npad), x_seq.dtype),
        grid=(T,),
        in_specs=[
            pl.BlockSpec((B, Npad), lambda t: (0, 0)),      # h0 (read at t==0)
            pl.BlockSpec((1, B, I), lambda t: (t, 0, 0)),   # per-step x block
            pl.BlockSpec((I, Npad), lambda t: (0, 0)),      # W_x, VMEM-resident
            pl.BlockSpec((Npad, Npad), lambda t: (0, 0)),   # W_h, VMEM-resident
            pl.BlockSpec((1, Npad), lambda t: (0, 0)),      # bias
        ],
        out_specs=pl.BlockSpec((1, B, Npad), lambda t: (t, 0, 0)),
        scratch_shapes=[pltpu.VMEM((B, Npad), jnp.float32)],
        compiler_params=pltpu.CompilerParams(
            dimension_semantics=("arbitrary",)),
    )(h0_pad, x_seq, w_x, w_h_pad, b)

    outputs = y[:, :, H:H + O]        # [T, B, O]
    final_hidden = y[-1, :, :H]       # [B, H]
    return outputs, final_hidden


# ---------------------------------------------------------------------------
# Pure-JAX reference (matches the PyTorch module exactly).
# ---------------------------------------------------------------------------
def rnn_cell_ref(x, h, w_i2h, b_i2h, w_i2o, b_i2o):
    combined = jnp.concatenate([x, h], axis=1)
    hidden = combined @ w_i2h.T + b_i2h
    output = combined @ w_i2o.T + b_i2o
    return output, hidden


if __name__ == "__main__":
    input_size, hidden_size, output_size = 16, 32, 8
    batch, seq_len = 2, 8

    key = jax.random.PRNGKey(0)
    k = jax.random.split(key, 6)
    fan_in = input_size + hidden_size
    bound = float(1.0 / jnp.sqrt(fan_in))

    # Deterministic parameter init (uniform, like nn.Linear default).
    w_i2h = jax.random.uniform(k[0], (hidden_size, fan_in), jnp.float32, -bound, bound)
    b_i2h = jax.random.uniform(k[1], (hidden_size,), jnp.float32, -bound, bound)
    w_i2o = jax.random.uniform(k[2], (output_size, fan_in), jnp.float32, -bound, bound)
    b_i2o = jax.random.uniform(k[3], (output_size,), jnp.float32, -bound, bound)

    x = jax.random.normal(k[4], (batch, input_size), jnp.float32)
    h0 = jnp.zeros((batch, hidden_size), jnp.float32)          # init_hidden()
    x_seq = jax.random.normal(k[5], (seq_len, batch, input_size), jnp.float32)

    # One-time packing, hoisted out of any timestep loop.
    w_x, w_h, b = jax.block_until_ready(
        pack_rnn_params(w_i2h, b_i2h, w_i2o, b_i2o))

    # --- single step: exact module forward ---
    out, hid = rnn_cell(x, h0, w_x, w_h, b,
                        hidden_size=hidden_size, output_size=output_size)
    jax.block_until_ready((out, hid))
    out_ref, hid_ref = rnn_cell_ref(x, h0, w_i2h, b_i2h, w_i2o, b_i2o)
    assert out.shape == (batch, output_size)
    assert hid.shape == (batch, hidden_size)
    assert jnp.allclose(out, out_ref, atol=1e-5, rtol=1e-5)
    assert jnp.allclose(hid, hid_ref, atol=1e-5, rtol=1e-5)

    # --- sequence-fused kernel: grid=(T,), VMEM-resident weights/state ---
    outs, hid_T = rnn_sequence(x_seq, h0, w_x, w_h, b,
                               hidden_size=hidden_size, output_size=output_size)
    jax.block_until_ready((outs, hid_T))

    h_ref = h0
    for t in range(seq_len):
        o_t_ref, h_ref = rnn_cell_ref(x_seq[t], h_ref, w_i2h, b_i2h, w_i2o, b_i2o)
        assert jnp.allclose(outs[t], o_t_ref, atol=1e-5, rtol=1e-5)
    assert jnp.allclose(hid_T, h_ref, atol=1e-5, rtol=1e-5)

    print("KERNEL_OK")
</pallas_src>

<mosaic_0001>
module attributes {stable_mosaic.version = 11 : i64} {
  func.func @_rnn_cell_kernel(%arg0: memref<2x16xf32, #tpu.memory_space<vmem>>, %arg1: memref<2x32xf32, #tpu.memory_space<vmem>>, %arg2: memref<16x128xf32, #tpu.memory_space<vmem>>, %arg3: memref<32x128xf32, #tpu.memory_space<vmem>>, %arg4: memref<1x128xf32, #tpu.memory_space<vmem>>, %arg5: memref<2x128xf32, #tpu.memory_space<vmem>>) attributes {dimension_semantics = [], scalar_prefetch = 0 : i64, scratch_operands = 0 : i64, tpu.core_type = #tpu.core_type<tc>} {
    %c0 = arith.constant 0 : index
    %c0_0 = arith.constant 0 : index
    %0 = vector.load %arg0[%c0, %c0_0] : memref<2x16xf32, #tpu.memory_space<vmem>>, vector<2x16xf32>
    %c0_1 = arith.constant 0 : index
    %c0_2 = arith.constant 0 : index
    %1 = vector.load %arg2[%c0_1, %c0_2] : memref<16x128xf32, #tpu.memory_space<vmem>>, vector<16x128xf32>
    %cst = arith.constant dense<0.000000e+00> : vector<2x128xf32>
    %2 = tpu.matmul %0, %1, %cst {dimension_numbers = #tpu.dot_dimension_numbers<[1], [0], [0], [1], [0, 0, 1, 1], [], []>} : vector<2x16xf32>, vector<16x128xf32>, vector<2x128xf32> -> vector<2x128xf32>
    %c0_3 = arith.constant 0 : index
    %c0_4 = arith.constant 0 : index
    %3 = vector.load %arg1[%c0_3, %c0_4] : memref<2x32xf32, #tpu.memory_space<vmem>>, vector<2x32xf32>
    %c0_5 = arith.constant 0 : index
    %c0_6 = arith.constant 0 : index
    %4 = vector.load %arg3[%c0_5, %c0_6] : memref<32x128xf32, #tpu.memory_space<vmem>>, vector<32x128xf32>
    %cst_7 = arith.constant dense<0.000000e+00> : vector<2x128xf32>
    %5 = tpu.matmul %3, %4, %cst_7 {dimension_numbers = #tpu.dot_dimension_numbers<[1], [0], [0], [1], [0, 0, 1, 1], [], []>} : vector<2x32xf32>, vector<32x128xf32>, vector<2x128xf32> -> vector<2x128xf32>
    %6 = arith.addf %2, %5 : vector<2x128xf32>
    %c0_8 = arith.constant 0 : index
    %c0_9 = arith.constant 0 : index
    %7 = vector.load %arg4[%c0_8, %c0_9] : memref<1x128xf32, #tpu.memory_space<vmem>>, vector<1x128xf32>
    %8 = vector.broadcast %7 : vector<1x128xf32> to vector<2x128xf32>
    %9 = arith.addf %6, %8 : vector<2x128xf32>
    %c0_10 = arith.constant 0 : index
    %c0_11 = arith.constant 0 : index
    %10 = vector.load %arg5[%c0_10, %c0_11] : memref<2x128xf32, #tpu.memory_space<vmem>>, vector<2x128xf32>
    tpu.vector_store %arg5[%c0_10, %c0_11], %9 {strides = array<i32>} : memref<2x128xf32, #tpu.memory_space<vmem>>, vector<2x128xf32>,
    return
  }
}

</mosaic_0001>

<llo_original>
// kernel: rnn_cell.1
$region0: #{rnn_cell.1}
  #allocation0 [shape = 'u32[]', space=smem, size = 0x4, offset = 0x4, fixed_abs, tag = 'smem constant byte address 0x4 - core index']
  #allocation1 [shape = 'u32[144,128]{1,0:T(1,128)}', space=vmem, size = 0x12000, scoped, tag = 'internal scratch']
  %s0 = inlined_call_operand.hbm [shape: f32[2,16], index: 0, kind: input, shape index: {}]
  %s1 = inlined_call_operand.hbm [shape: f32[2,32], index: 1, kind: input, shape index: {}]
  %s2 = inlined_call_operand.hbm [shape: f32[16,128], index: 2, kind: input, shape index: {}]
  %s3 = inlined_call_operand.hbm [shape: f32[32,128], index: 3, kind: input, shape index: {}]
  %s4 = inlined_call_operand.vmem [shape: f32[1,128], index: 4, kind: input, shape index: {}]
  %s5 = inlined_call_operand.vmem [shape: f32[2,128], index: 5, kind: output, shape index: {}]
  %s6 = sld [smem:[#allocation0]]
  $region46: #{rnn_cell.1} parent=0
    _
  %s8 = ssub.s32 1, %s6
  %s9 = scalar_select 0, %s8, %s6
  $region1: #{rnn_cell.1} parent=0
    #allocation2 [shape = 'u8[1024]{0}', space=vmem, size = 0x400, scoped, tag = 'input window, operand 0, single buffered']
    #allocation3 [shape = 's32[1]{0}', space=sflag, size = 0x4, scoped, tag = 'scoped memory for rnn_cell.1']
    #allocation4 [shape = 'u8[1024]{0}', space=vmem, size = 0x400, scoped, tag = 'input window, operand 1, single buffered']
    #allocation5 [shape = 's32[1]{0}', space=sflag, size = 0x4, scoped, tag = 'scoped memory for rnn_cell.1']
    #allocation6 [shape = 'u8[8192]{0}', space=vmem, size = 0x2000, scoped, tag = 'input window, operand 2, single buffered']
    #allocation7 [shape = 'u8[16384]{0}', space=vmem, size = 0x4000, scoped, tag = 'input window, operand 3, single buffered']
    #allocation8 [shape = 's32[1]{0}', space=sflag, size = 0x4, scoped, tag = 'scoped memory for rnn_cell.1']
    %10 = vsyncpa [#allocation3], 0
    %11 = vsyncpa [#allocation5], 0
    %12 = vsyncpa [#allocation8], 0
    // Predicated region
    $region2: #{rnn_cell.1} parent=1 // pred_check
      _
    $region3: #{rnn_cell.1} parent=1 // pred_check_branch
      %14 = sbr.rel (0) target = $region5
    $region4: #{rnn_cell.1} parent=1 // pred_region
      %s16 = ssub.s32 32, 32
      %17 = vsyncadd [#allocation3], %s16
      %s19 = sshll.u32 [#allocation2], 4
      %s20 = int_to_ptr.vmem [resolvable:$true] %s19
      %22 = dma.hbm_to_vmem [thread:$0]  %s0, 32, %s20, [#allocation3]
    $region5: #{rnn_cell.1} parent=1 // pred_fallthru
      _
    // Predicated region
    $region6: #{rnn_cell.1} parent=1 // pred_check
      _
    $region7: #{rnn_cell.1} parent=1 // pred_check_branch
      %24 = sbr.rel (0) target = $region9
    $region8: #{rnn_cell.1} parent=1 // pred_region
      %s26 = ssub.s32 32, 32
      %27 = vsyncadd [#allocation5], %s26
      %s29 = sshll.u32 [#allocation4], 4
      %s30 = int_to_ptr.vmem [resolvable:$true] %s29
      %32 = dma.hbm_to_vmem [thread:$0]  %s1, 32, %s30, [#allocation5]
    $region9: #{rnn_cell.1} parent=1 // pred_fallthru
      _
    // Predicated region
    $region10: #{rnn_cell.1} parent=1 // pred_check
      _
    $region11: #{rnn_cell.1} parent=1 // pred_check_branch
      %34 = sbr.rel (0) target = $region13
    $region12: #{rnn_cell.1} parent=1 // pred_region
      %s36 = ssub.s32 256, 256
      %37 = vsyncadd [#allocation5], %s36
      %s38 = sshll.u32 [#allocation6], 4
      %s39 = int_to_ptr.vmem [resolvable:$true] %s38
      %44 = dma.hbm_to_vmem [thread:$0]  %s2, 256, %s39, [#allocation5], 128, 128, 8
    $region13: #{rnn_cell.1} parent=1 // pred_fallthru
      _
    // Predicated region
    $region14: #{rnn_cell.1} parent=1 // pred_check
      _
    $region15: #{rnn_cell.1} parent=1 // pred_check_branch
      %46 = sbr.rel (0) target = $region17
    $region16: #{rnn_cell.1} parent=1 // pred_region
      %s48 = ssub.s32 512, 512
      %49 = vsyncadd [#allocation8], %s48
      %s50 = sshll.u32 [#allocation7], 4
      %s51 = int_to_ptr.vmem [resolvable:$true] %s50
      %56 = dma.hbm_to_vmem [thread:$0]  %s3, 512, %s51, [#allocation8], 128, 128, 8
    $region17: #{rnn_cell.1} parent=1 // pred_fallthru
      _
    // Predicated region
    $region18: #{rnn_cell.1} parent=1 // pred_check
      _
    $region19: #{rnn_cell.1} parent=1 // pred_check_branch
      %58 = sbr.rel (0) target = $region21
    $region20: #{rnn_cell.1} parent=1 // pred_region
      _
    $region21: #{rnn_cell.1} parent=1 // pred_fallthru
      _
    // Predicated region
    $region22: #{rnn_cell.1} parent=1 // pred_check
      _
    $region23: #{rnn_cell.1} parent=1 // pred_check_branch
      %60 = sbr.rel (0) target = $region25
    $region24: #{rnn_cell.1} parent=1 // pred_region
      %61 = dma.done [#allocation3], 32
    $region25: #{rnn_cell.1} parent=1 // pred_fallthru
      _
    // Predicated region
    $region26: #{rnn_cell.1} parent=1 // pred_check
      _
    $region27: #{rnn_cell.1} parent=1 // pred_check_branch
      %63 = sbr.rel (0) target = $region29
    $region28: #{rnn_cell.1} parent=1 // pred_region
      %64 = dma.done [#allocation5], 32
    $region29: #{rnn_cell.1} parent=1 // pred_fallthru
      _
    // Predicated region
    $region30: #{rnn_cell.1} parent=1 // pred_check
      _
    $region31: #{rnn_cell.1} parent=1 // pred_check_branch
      %66 = sbr.rel (0) target = $region33
    $region32: #{rnn_cell.1} parent=1 // pred_region
      %67 = dma.done [#allocation5], 256
    $region33: #{rnn_cell.1} parent=1 // pred_fallthru
      _
    // Predicated region
    $region34: #{rnn_cell.1} parent=1 // pred_check
      _
    $region35: #{rnn_cell.1} parent=1 // pred_check_branch
      %69 = sbr.rel (0) target = $region37
    $region36: #{rnn_cell.1} parent=1 // pred_region
      %70 = dma.done [#allocation8], 512
    $region37: #{rnn_cell.1} parent=1 // pred_fallthru
      _
    %v71 = vld [vmem:[#allocation2] sm:$0x3]
    %v72 = vld [vmem:[#allocation6] sm:$0xff]
    %v73 = vld [vmem:[#allocation6 + $0x8] sm:$0xff]
    %v74 = vld [vmem:[#allocation4] sm:$0x3]
    %v75 = vld [vmem:[#allocation7] sm:$0xff]
    %v76 = vld [vmem:[#allocation7 + $0x8] sm:$0xff]
    %v77 = vld [vmem:[#allocation7 + $0x10] sm:$0xff]
    %v78 = vld [vmem:[#allocation7 + $0x18] sm:$0xff]
    %vm79 = vcmask 261120
    %v81 = vsel %vm79, %v74, 0
    %83 = vmatprep.subr.mxu0 0.0
    %84 = vmatpush1.msra.mxu0 0.0
    %85 = vmatprep.subr.mxu0 0.0
    %86 = vmatpush1.msra.mxu0 0.0
    %87 = vmatprep.subr.mxu0 0.0
    %88 = vmatpush1.msra.mxu0 0.0
    %89 = vmatprep.subr.mxu0 0.0
    %90 = vmatpush1.msra.mxu0 0.0
    %91 = vmatprep.subr.mxu0 0.0
    %92 = vmatpush1.msra.mxu0 0.0
    %93 = vmatprep.subr.mxu0 0.0
    %94 = vmatpush1.msra.mxu0 0.0
    %95 = vmatprep.subr.mxu0 0.0
    %96 = vmatpush1.msra.mxu0 0.0
    %97 = vmatprep.subr.mxu0 0.0
    %98 = vmatpush1.msra.mxu0 0.0
    %99 = vmatprep.subr.mxu0 0.0
    %100 = vmatpush1.msra.mxu0 0.0
    %101 = vmatprep.subr.mxu0 0.0
    %102 = vmatpush1.msra.mxu0 0.0
    %103 = vmatprep.subr.mxu0 0.0
    %104 = vmatpush1.msra.mxu0 0.0
    %105 = vmatprep.subr.mxu0 0.0
    %106 = vmatpush1.msra.mxu0 0.0
    %107 = vmatprep.subr.mxu0 0.0
    %108 = vmatpush1.msra.mxu0 %v78
    %109 = vmatprep.subr.mxu0 0.0
    %110 = vmatpush1.msra.mxu0 %v77
    %111 = vmatprep.subr.mxu0 0.0
    %112 = vmatpush1.msra.mxu0 %v76
    %113 = vmatprep.subr.mxu0 0.0
    %114 = vmatpush1.msra.mxu0 %v75
    %115 = vmatprep.subr.mxu0 0.0
    %116 = vmatpush2.msra.mxu0 0.0
    %117 = vmatprep.subr.mxu0 0.0
    %118 = vmatpush2.msra.mxu0 0.0
    %119 = vmatprep.subr.mxu0 0.0
    %120 = vmatpush2.msra.mxu0 0.0
    %121 = vmatprep.subr.mxu0 0.0
    %122 = vmatpush2.msra.mxu0 0.0
    %123 = vmatprep.subr.mxu0 0.0
    %124 = vmatpush2.msra.mxu0 0.0
    %125 = vmatprep.subr.mxu0 0.0
    %126 = vmatpush2.msra.mxu0 0.0
    %127 = vmatprep.subr.mxu0 0.0
    %128 = vmatpush2.msra.mxu0 0.0
    %129 = vmatprep.subr.mxu0 0.0
    %130 = vmatpush2.msra.mxu0 0.0
    %131 = vmatprep.subr.mxu0 0.0
    %132 = vmatpush2.msra.mxu0 0.0
    %133 = vmatprep.subr.mxu0 0.0
    %134 = vmatpush2.msra.mxu0 0.0
    %135 = vmatprep.subr.mxu0 0.0
    %136 = vmatpush2.msra.mxu0 0.0
    %137 = vmatprep.subr.mxu0 0.0
    %138 = vmatpush2.msra.mxu0 0.0
    %139 = vmatprep.subr.mxu0 0.0
    %140 = vmatpush2.msra.mxu0 0.0
    %141 = vmatprep.subr.mxu0 0.0
    %142 = vmatpush2.msra.mxu0 0.0
    %143 = vmatprep.subr.mxu0 0.0
    %144 = vmatpush2.msra.mxu0 0.0
    %145 = vmatprep.subr.mxu0 0.0
    %146 = vmatpush2.msra.mxu0 0.0
    %147 = vmatprep.mubr.f32.mxu0 0.0
    %148 = vmatmul.mubr.f32.gmra.mxu0 %v81
    %v149 = vpop.f32.mrf.mxu0
    %v150 = vadd.f32 0.0, %v149
    %v151 = vpop.f32.mrf.mxu0
    %152 = vdwg.mxu0
    %vm153 = vcmask 130048
    %v155 = vsel %vm153, %v71, 0
    %157 = vmatprep.subr.mxu0 0.0
    %158 = vmatpush1.msra.mxu0 0.0
    %159 = vmatprep.subr.mxu0 0.0
    %160 = vmatpush1.msra.mxu0 0.0
    %161 = vmatprep.subr.mxu0 0.0
    %162 = vmatpush1.msra.mxu0 0.0
    %163 = vmatprep.subr.mxu0 0.0
    %164 = vmatpush1.msra.mxu0 0.0
    %165 = vmatprep.subr.mxu0 0.0
    %166 = vmatpush1.msra.mxu0 0.0
    %167 = vmatprep.subr.mxu0 0.0
    %168 = vmatpush1.msra.mxu0 0.0
    %169 = vmatprep.subr.mxu0 0.0
    %170 = vmatpush1.msra.mxu0 0.0
    %171 = vmatprep.subr.mxu0 0.0
    %172 = vmatpush1.msra.mxu0 0.0
    %173 = vmatprep.subr.mxu0 0.0
    %174 = vmatpush1.msra.mxu0 0.0
    %175 = vmatprep.subr.mxu0 0.0
    %176 = vmatpush1.msra.mxu0 0.0
    %177 = vmatprep.subr.mxu0 0.0
    %178 = vmatpush1.msra.mxu0 0.0
    %179 = vmatprep.subr.mxu0 0.0
    %180 = vmatpush1.msra.mxu0 0.0
    %181 = vmatprep.subr.mxu0 0.0
    %182 = vmatpush1.msra.mxu0 0.0
    %183 = vmatprep.subr.mxu0 0.0
    %184 = vmatpush1.msra.mxu0 0.0
    %185 = vmatprep.subr.mxu0 0.0
    %186 = vmatpush1.msra.mxu0 %v73
    %187 = vmatprep.subr.mxu0 0.0
    %188 = vmatpush1.msra.mxu0 %v72
    %189 = vmatprep.subr.mxu0 0.0
    %190 = vmatpush2.msra.mxu0 0.0
    %191 = vmatprep.subr.mxu0 0.0
    %192 = vmatpush2.msra.mxu0 0.0
    %193 = vmatprep.subr.mxu0 0.0
    %194 = vmatpush2.msra.mxu0 0.0
    %195 = vmatprep.subr.mxu0 0.0
    %196 = vmatpush2.msra.mxu0 0.0
    %197 = vmatprep.subr.mxu0 0.0
    %198 = vmatpush2.msra.mxu0 0.0
    %199 = vmatprep.subr.mxu0 0.0
    %200 = vmatpush2.msra.mxu0 0.0
    %201 = vmatprep.subr.mxu0 0.0
    %202 = vmatpush2.msra.mxu0 0.0
    %203 = vmatprep.subr.mxu0 0.0
    %204 = vmatpush2.msra.mxu0 0.0
    %205 = vmatprep.subr.mxu0 0.0
    %206 = vmatpush2.msra.mxu0 0.0
    %207 = vmatprep.subr.mxu0 0.0
    %208 = vmatpush2.msra.mxu0 0.0
    %209 = vmatprep.subr.mxu0 0.0
    %210 = vmatpush2.msra.mxu0 0.0
    %211 = vmatprep.subr.mxu0 0.0
    %212 = vmatpush2.msra.mxu0 0.0
    %213 = vmatprep.subr.mxu0 0.0
    %214 = vmatpush2.msra.mxu0 0.0
    %215 = vmatprep.subr.mxu0 0.0
    %216 = vmatpush2.msra.mxu0 0.0
    %217 = vmatprep.subr.mxu0 0.0
    %218 = vmatpush2.msra.mxu0 0.0
    %219 = vmatprep.subr.mxu0 0.0
    %220 = vmatpush2.msra.mxu0 0.0
    %221 = vmatprep.mubr.f32.mxu0 0.0
    %222 = vmatmul.mubr.f32.gmra.mxu0 %v155
    %v223 = vpop.f32.mrf.mxu0
    %v224 = vadd.f32 %v150, %v223
    %v225 = vpop.f32.mrf.mxu0
    %226 = vdwg.mxu0
    %v227 = vld [vmem:[%s4] sm:$0x1]
    %v229 = vlaneseq
    %v230 = vshrl.u32 %v229, 7
    %v231 = vsub.s32 0, %v230
    %v232 = vrot.slane %v227, %v231
    %v234 = vadd.f32 %v224, %v232
    %235 = vst [vmem:[%s5] sm:$0x3] %v234
    // Predicated region
    $region38: #{rnn_cell.1} parent=1 // pred_check
      _
    $region39: #{rnn_cell.1} parent=1 // pred_check_branch
      %237 = sbr.rel (0) target = $region41
    $region40: #{rnn_cell.1} parent=1 // pred_region
      _
    $region41: #{rnn_cell.1} parent=1 // pred_fallthru
      _
    // Predicated region
    $region42: #{rnn_cell.1} parent=1 // pred_check
      _
    $region43: #{rnn_cell.1} parent=1 // pred_check_branch
      %239 = sbr.rel (0) target = $region45
    $region44: #{rnn_cell.1} parent=1 // pred_region
      _
    $region45: #{rnn_cell.1} parent=1 // pred_fallthru
      _
    %240 = vsyncpa [#allocation3], 1
    %241 = vsyncpa [#allocation5], 1
    %242 = vsyncpa [#allocation8], 1

</llo_original>
